<compile_context>
chip_gen: v7x
topology: tpu7x:2x2x1
jax: 0.10.0
libtpu: 0.0.40
codegen_flags: <defaults>
</compile_context>

<pallas_src>
import jax
import jax.numpy as jnp
from jax.experimental import pallas as pl
from jax.experimental.pallas import tpu as pltpu


def _round_up(x, m):
    return (x + m - 1) // m * m


def rezero_kernel(g_ref, x_ref, w_ref, b_ref, o_ref, acc_ref):
    """One (tm, tn) output tile, reducing over the K grid axis.

    g_ref  : (1,)     f32 ReZero gate, scalar-prefetched into SMEM
    x_ref  : (tm, tk) bf16 input tile in VMEM
    w_ref  : (tk, tn) bf16 weight tile in VMEM
    b_ref  : (1, tn)  f32 bias tile in VMEM
    o_ref  : (tm, tn) output tile in VMEM
    acc_ref: (tm, tn) f32 accumulator scratch (resident across the K axis)
    """
    k = pl.program_id(2)

    @pl.when(k == 0)
    def _init():
        acc_ref[...] = jnp.zeros_like(acc_ref)

    # Pure MXU + accumulate inner loop; bias/gate are NOT applied per k-step.
    acc_ref[...] += jnp.dot(x_ref[...], w_ref[...],
                            preferred_element_type=jnp.float32)

    @pl.when(k == pl.num_programs(2) - 1)
    def _finalize():
        g = g_ref[0]
        o_ref[...] = ((acc_ref[...] + b_ref[...]) * g).astype(o_ref.dtype)


def rezero_dense(x, w, b, g, *, tm=256, tn=256, tk=512):
    """ReZero(dense): ((x @ W + b) * g).  x: (B,S,H); w: (H,N); b: (N,); g: ()."""
    B, S, H = x.shape
    M, K = B * S, H
    N = w.shape[1]

    # bf16 feeds the MXU at full rate; accumulation stays f32 in scratch.
    x2d = x.reshape(M, K).astype(jnp.bfloat16)
    w_bf = w.astype(jnp.bfloat16)
    b2d = b.reshape(1, N).astype(jnp.float32)
    g1d = jnp.asarray(g, jnp.float32).reshape(1)

    # Clamp tile sizes to the (aligned) problem size, keeping (8,128) layout.
    tm = min(tm, _round_up(M, 8))
    tn = min(tn, _round_up(N, 128))
    tk = min(tk, _round_up(K, 128))

    Mp, Np, Kp = _round_up(M, tm), _round_up(N, tn), _round_up(K, tk)
    if (Mp, Kp) != (M, K):
        x2d = jnp.pad(x2d, ((0, Mp - M), (0, Kp - K)))
    if (Kp, Np) != (K, N):
        w_bf = jnp.pad(w_bf, ((0, Kp - K), (0, Np - N)))
    if Np != N:
        b2d = jnp.pad(b2d, ((0, 0), (0, Np - N)))

    grid = (Mp // tm, Np // tn, Kp // tk)

    out2d = pl.pallas_call(
        rezero_kernel,
        out_shape=jax.ShapeDtypeStruct((Mp, Np), x.dtype),
        grid_spec=pltpu.PrefetchScalarGridSpec(
            num_scalar_prefetch=1,              # g lands in SMEM
            grid=grid,
            in_specs=[
                pl.BlockSpec((tm, tk), lambda i, j, k, g: (i, k)),   # x
                pl.BlockSpec((tk, tn), lambda i, j, k, g: (k, j)),   # W
                pl.BlockSpec((1, tn), lambda i, j, k, g: (0, j)),    # b
            ],
            out_specs=pl.BlockSpec((tm, tn), lambda i, j, k, g: (i, j)),
            scratch_shapes=[pltpu.VMEM((tm, tn), jnp.float32)],
        ),
        compiler_params=pltpu.CompilerParams(
            dimension_semantics=("parallel", "parallel", "arbitrary"),
            vmem_limit_bytes=48 << 20,   # fits v7x's 64 MiB/TC with headroom
        ),
    )(g1d, x2d, w_bf, b2d)

    return out2d[:M, :N].reshape(B, S, N)


if __name__ == "__main__":
    # Small but lane-dense shapes (hidden is a multiple of 128 per review).
    B, S, H = 2, 8, 256

    key = jax.random.PRNGKey(0)
    kx, kw, kb = jax.random.split(key, 3)

    x = jax.random.normal(kx, (B, S, H), dtype=jnp.float32)
    # Deterministic parameter init for the chosen fn (dense layer).
    w = jax.random.normal(kw, (H, H), dtype=jnp.float32) * 0.02
    b = jax.random.normal(kb, (H,), dtype=jnp.float32) * 0.02
    # ReZero gate, exactly as in __init__: torch.tensor(0.001)
    g = jnp.float32(0.001)

    # Small tiles here so the tiny demo still exercises the multi-tile N axis
    # and the K-reduction init/finalize path; production shapes should keep
    # the defaults (tm=tn=256, tk=512).
    out = rezero_dense(x, w, b, g, tm=128, tn=128, tk=128)
    out = jax.block_until_ready(out)

    # Reference in f32 at highest precision.  The kernel uses bf16 MXU inputs
    # with f32 accumulation, so tolerances are relaxed accordingly.
    ref = (jnp.dot(x.reshape(B * S, H), w,
                   precision=jax.lax.Precision.HIGHEST) + b) * g
    ref = ref.reshape(B, S, H)

    assert out.shape == (B, S, H)
    assert jnp.allclose(out, ref, rtol=2e-2, atol=1e-5), "mismatch vs reference"

    print("KERNEL_OK")
</pallas_src>

<mosaic_0001>
module attributes {stable_mosaic.version = 11 : i64} {
  func.func @rezero_kernel(%arg0: i32, %arg1: i32, %arg2: i32, %arg3: memref<1xf32, #tpu.memory_space<smem>>, %arg4: memref<16x128xbf16, #tpu.memory_space<vmem>>, %arg5: memref<128x128xbf16, #tpu.memory_space<vmem>>, %arg6: memref<1x128xf32, #tpu.memory_space<vmem>>, %arg7: memref<16x128xf32, #tpu.memory_space<vmem>>, %arg8: memref<16x128xf32, #tpu.memory_space<vmem>>) attributes {dimension_semantics = [#tpu.dimension_semantics<parallel>, #tpu.dimension_semantics<parallel>, #tpu.dimension_semantics<arbitrary>], iteration_bounds = array<i64: 1, 2, 2>, scalar_prefetch = 1 : i64, scratch_operands = 1 : i64, tpu.core_type = #tpu.core_type<tc>, window_params = [{transform_indices = @transform_0, window_bounds = array<i64: 16, 128>}, {transform_indices = @transform_1, window_bounds = array<i64: 128, 128>}, {transform_indices = @transform_2, window_bounds = array<i64: 1, 128>}, {transform_indices = @transform_3, window_bounds = array<i64: 16, 128>}]} {
    %c0_i32 = arith.constant 0 : i32
    %0 = arith.cmpi eq, %arg2, %c0_i32 : i32
    %1 = arith.extui %0 : i1 to i32
    %c0_i32_0 = arith.constant 0 : i32
    %2 = arith.cmpi ne, %1, %c0_i32_0 : i32
    scf.if %2 {
      %cst_9 = arith.constant 0.000000e+00 : f32
      %12 = vector.broadcast %cst_9 : f32 to vector<16x128xf32>
      %c0_10 = arith.constant 0 : index
      %c0_11 = arith.constant 0 : index
      %13 = vector.load %arg8[%c0_10, %c0_11] : memref<16x128xf32, #tpu.memory_space<vmem>>, vector<16x128xf32>
      tpu.vector_store %arg8[%c0_10, %c0_11], %12 {strides = array<i32>} : memref<16x128xf32, #tpu.memory_space<vmem>>, vector<16x128xf32>,
    } else {
    }
    %c0 = arith.constant 0 : index
    %c0_1 = arith.constant 0 : index
    %3 = vector.load %arg8[%c0, %c0_1] : memref<16x128xf32, #tpu.memory_space<vmem>>, vector<16x128xf32>
    %c0_2 = arith.constant 0 : index
    %c0_3 = arith.constant 0 : index
    %4 = vector.load %arg4[%c0_2, %c0_3] : memref<16x128xbf16, #tpu.memory_space<vmem>>, vector<16x128xbf16>
    %c0_4 = arith.constant 0 : index
    %c0_5 = arith.constant 0 : index
    %5 = vector.load %arg5[%c0_4, %c0_5] : memref<128x128xbf16, #tpu.memory_space<vmem>>, vector<128x128xbf16>
    %cst = arith.constant dense<0.000000e+00> : vector<16x128xf32>
    %6 = tpu.matmul %4, %5, %cst {dimension_numbers = #tpu.dot_dimension_numbers<[1], [0], [0], [1], [0, 0, 1, 1], [], []>} : vector<16x128xbf16>, vector<128x128xbf16>, vector<16x128xf32> -> vector<16x128xf32>
    %7 = arith.addf %3, %6 : vector<16x128xf32>
    %c0_6 = arith.constant 0 : index
    %c0_7 = arith.constant 0 : index
    %8 = vector.load %arg8[%c0_6, %c0_7] : memref<16x128xf32, #tpu.memory_space<vmem>>, vector<16x128xf32>
    tpu.vector_store %arg8[%c0_6, %c0_7], %7 {strides = array<i32>} : memref<16x128xf32, #tpu.memory_space<vmem>>, vector<16x128xf32>,
    %c1_i32 = arith.constant 1 : i32
    %9 = arith.cmpi eq, %arg2, %c1_i32 : i32
    %10 = arith.extui %9 : i1 to i32
    %c0_i32_8 = arith.constant 0 : i32
    %11 = arith.cmpi ne, %10, %c0_i32_8 : i32
    scf.if %11 {
      %c0_9 = arith.constant 0 : index
      %12 = memref.load %arg3[%c0_9] : memref<1xf32, #tpu.memory_space<smem>>
      %c0_10 = arith.constant 0 : index
      %c0_11 = arith.constant 0 : index
      %13 = vector.load %arg8[%c0_10, %c0_11] : memref<16x128xf32, #tpu.memory_space<vmem>>, vector<16x128xf32>
      %c0_12 = arith.constant 0 : index
      %c0_13 = arith.constant 0 : index
      %14 = vector.load %arg6[%c0_12, %c0_13] : memref<1x128xf32, #tpu.memory_space<vmem>>, vector<1x128xf32>
      %15 = vector.broadcast %14 : vector<1x128xf32> to vector<16x128xf32>
      %16 = arith.addf %13, %15 : vector<16x128xf32>
      %17 = vector.broadcast %12 : f32 to vector<16x128xf32>
      %18 = arith.mulf %16, %17 : vector<16x128xf32>
      %c0_14 = arith.constant 0 : index
      %c0_15 = arith.constant 0 : index
      %19 = vector.load %arg7[%c0_14, %c0_15] : memref<16x128xf32, #tpu.memory_space<vmem>>, vector<16x128xf32>
      tpu.vector_store %arg7[%c0_14, %c0_15], %18 {strides = array<i32>} : memref<16x128xf32, #tpu.memory_space<vmem>>, vector<16x128xf32>,
    } else {
    }
    return
  }
  func.func @transform_0(%arg0: i32, %arg1: i32, %arg2: i32, %arg3: memref<1xf32, #tpu.memory_space<smem>>) -> (i32, i32) {
    %c0_i32 = arith.constant 0 : i32
    return %arg0, %arg2 : i32, i32
  }
  func.func @transform_1(%arg0: i32, %arg1: i32, %arg2: i32, %arg3: memref<1xf32, #tpu.memory_space<smem>>) -> (i32, i32) {
    %c0_i32 = arith.constant 0 : i32
    return %arg2, %arg1 : i32, i32
  }
  func.func @transform_2(%arg0: i32, %arg1: i32, %arg2: i32, %arg3: memref<1xf32, #tpu.memory_space<smem>>) -> (i32, i32) {
    %c0_i32 = arith.constant 0 : i32
    %c0_i32_0 = arith.constant 0 : i32
    return %c0_i32, %arg1 : i32, i32
  }
  func.func @transform_3(%arg0: i32, %arg1: i32, %arg2: i32, %arg3: memref<1xf32, #tpu.memory_space<smem>>) -> (i32, i32) {
    %c0_i32 = arith.constant 0 : i32
    return %arg0, %arg1 : i32, i32
  }
}

</mosaic_0001>

<llo_original>
// kernel: tpu_custom_call.1
$region0: #{tpu_custom_call.1}
  #allocation0 [shape = 'u32[]', space=smem, size = 0x4, offset = 0x4, fixed_abs, tag = 'smem constant byte address 0x4 - core index']
  #allocation1 [shape = 'u32[144,128]{1,0:T(1,128)}', space=vmem, size = 0x12000, scoped, tag = 'internal scratch']
  #allocation2 [shape = 'f32[16,128]{1,0:T(8,128)}', space=vmem, size = 0x2000, scoped, tag = 'scratch operand']
  #allocation3 [shape = 's32[1]{0}', space=sflag, size = 0x4, scoped, tag = 'scoped memory for tpu_custom_call.1']
  #allocation4 [shape = 'f32[1]{0:T(128)S(6)}', space=smem, size = 0x200, scoped, tag = 'prefetched SMEM operand 0']
  %s0 = inlined_call_operand.<no memory space> [shape: f32[1], index: 0, kind: input, shape index: {}]
  %s1 = inlined_call_operand.hbm [shape: bf16[16,256], index: 1, kind: input, shape index: {}]
  %s2 = inlined_call_operand.hbm [shape: bf16[256,256], index: 2, kind: input, shape index: {}]
  %s3 = inlined_call_operand.vmem [shape: f32[1,256], index: 3, kind: input, shape index: {}]
  %s4 = inlined_call_operand.hbm [shape: f32[16,256], index: 4, kind: output, shape index: {}]
  %s5 = sld [smem:[#allocation0]]
  $region61: #{tpu_custom_call.1} parent=0
    _
  %s7 = ssub.s32 1, %s5
  %s8 = scalar_select 0, %s7, %s5
  %9 = sst [smem:[#allocation4]] %s0
  $region1: #{tpu_custom_call.1} parent=0
    #allocation5 [shape = 'u8[8192]{0}', space=vmem, size = 0x2000, scoped, tag = 'input window, operand 1']
    #allocation6 [shape = 's32[2]{0}', space=sflag, size = 0x8, scoped, tag = 'scoped memory for tpu_custom_call.1']
    #allocation7 [shape = 's32[2]{0}', space=sflag, size = 0x8, scoped, tag = 'scoped memory for tpu_custom_call.1']
    #allocation8 [shape = 'u8[65536]{0}', space=vmem, size = 0x10000, scoped, tag = 'input window, operand 2']
    #allocation9 [shape = 's32[2]{0}', space=sflag, size = 0x8, scoped, tag = 'scoped memory for tpu_custom_call.1']
    #allocation10 [shape = 'u8[16384]{0}', space=vmem, size = 0x4000, scoped, tag = 'output window, operand 0']
    %10 = vsyncpa [#allocation6], 0
    %s11 = scalar_lea.sflag [#allocation6], 1
    %12 = vsyncpa %s11, 0
    %13 = vsyncpa [#allocation9], 0
    %s14 = scalar_lea.sflag [#allocation9], 1
    %15 = vsyncpa %s14, 0
    %16 = vsyncpa [#allocation7], 0
    %s17 = scalar_lea.sflag [#allocation7], 1
    %18 = vsyncpa %s17, 0
    loop: start=0, step=1, limit=6
    $region2: #{tpu_custom_call.1} parent=1 // loop_pre_header
      _
    $region3: #{tpu_custom_call.1} parent=1 // loop_header
      %s20 = sphi 0, %s24
      %p21 = scmp.ge.s32.totalorder %s20, 6
      %s27 = sphi 0, %s46
      %s28 = sphi 0, %s42
      %s29 = sphi 0, %s38
      %s30 = sphi 0, %s27
      %s31 = sphi 0, %s28
      %s32 = sphi 0, %s29
      %s33 = sphi 0, %s30
      %s34 = sphi 0, %s31
      %s35 = sphi 0, %s32
      %s51 = sphi 0, %s53
      %s54 = sphi 0, %s51
      %s55 = sphi 0, %s54
      %s71 = sphi 0, %s55
      %s79 = sphi 0, %s81
      %s82 = sphi 0, %s79
      %s83 = sphi 0, %s82
      %s99 = sphi 0, %s83
      %s105 = sphi 0, %s107
      %s108 = sphi 0, %s105
      %s109 = sphi 0, %s108
      %s125 = sphi 0, %s109
      %s133 = sphi 0, %s135
      %s136 = sphi 0, %s133
      %s137 = sphi 0, %s136
      %s153 = sphi 0, %s137
    $region4: #{tpu_custom_call.1} parent=1 // loop_header_branch
      %23 = sbr.rel (%p21) target = $region8
    $region5: #{tpu_custom_call.1} parent=1 // loop_body
      %s25 = ssub.s32 %s20, 1
      %s26 = ssub.s32 %s20, 2
      %s36 = sadd.s32 1, %s29
      %p37 = scmp.ge.s32.totalorder %s36, 2
      %s38 = scalar_select %p37, 0, %s36
      %s39 = sadd.s32 1, %s28
      %s40 = scalar_select %p37, %s39, %s28
      %p41 = scmp.ge.s32.totalorder %s40, 2
      %s42 = scalar_select %p41, 0, %s40
      %s43 = sadd.s32 1, %s27
      %s44 = scalar_select %p41, %s43, %s27
      %p45 = scmp.ge.s32.totalorder %s44, 1
      %s46 = scalar_select %p45, 0, %s44
      %s47 = ssub.s32 %s27, %s46
      %s48 = ssub.s32 %s29, %s38
      %s49 = sor.u32 %s47, %s48
      %p50 = scmp.eq.s32.totalorder %s49, 0
      %s52 = sadd.s32 %s51, 1
      %s53 = scalar_select %p50, %s51, %s52
      %p56 = pneg %p50
      %p57 = scmp.eq.s32.totalorder %s20, 3
      %p58 = por %p56, %p57
      %p59 = scmp.ne.s32.totalorder %s51, %s54
      %p60 = scmp.eq.s32.totalorder %s20, 0
      %p61 = por %p59, %p60
      %p62 = scmp.ne.s32.totalorder %s51, %s54
      %p63 = scmp.eq.s32.totalorder %s25, 3
      %p64 = por %p62, %p63
      %p65 = scmp.ne.s32.totalorder %s54, %s55
      %p66 = scmp.eq.s32.totalorder %s25, 0
      %p67 = por %p65, %p66
      %p68 = scmp.ne.s32.totalorder %s54, %s55
      %p69 = scmp.eq.s32.totalorder %s26, 3
      %p70 = por %p68, %p69
      %p72 = scmp.ne.s32.totalorder %s55, %s71
      %p73 = scmp.eq.s32.totalorder %s26, 0
      %p74 = por %p72, %p73
      %s75 = ssub.s32 %s29, %s38
      %s76 = ssub.s32 %s28, %s42
      %s77 = sor.u32 %s75, %s76
      %p78 = scmp.eq.s32.totalorder %s77, 0
      %s80 = sadd.s32 %s79, 1
      %s81 = scalar_select %p78, %s79, %s80
      %p84 = pneg %p78
      %p85 = scmp.eq.s32.totalorder %s20, 3
      %p86 = por %p84, %p85
      %p87 = scmp.ne.s32.totalorder %s79, %s82
      %p88 = scmp.eq.s32.totalorder %s20, 0
      %p89 = por %p87, %p88
      %p90 = scmp.ne.s32.totalorder %s79, %s82
      %p91 = scmp.eq.s32.totalorder %s25, 3
      %p92 = por %p90, %p91
      %p93 = scmp.ne.s32.totalorder %s82, %s83
      %p94 = scmp.eq.s32.totalorder %s25, 0
      %p95 = por %p93, %p94
      %p96 = scmp.ne.s32.totalorder %s82, %s83
      %p97 = scmp.eq.s32.totalorder %s26, 3
      %p98 = por %p96, %p97
      %p100 = scmp.ne.s32.totalorder %s83, %s99
      %p101 = scmp.eq.s32.totalorder %s26, 0
      %p102 = por %p100, %p101
      %s103 = ssub.s32 %s28, %s42
      %p104 = scmp.eq.s32.totalorder %s103, 0
      %s106 = sadd.s32 %s105, 1
      %s107 = scalar_select %p104, %s105, %s106
      %p110 = pneg %p104
      %p111 = scmp.eq.s32.totalorder %s20, 3
      %p112 = por %p110, %p111
      %p113 = scmp.ne.s32.totalorder %s105, %s108
      %p114 = scmp.eq.s32.totalorder %s20, 0
      %p115 = por %p113, %p114
      %p116 = scmp.ne.s32.totalorder %s105, %s108
      %p117 = scmp.eq.s32.totalorder %s25, 3
      %p118 = por %p116, %p117
      %p119 = scmp.ne.s32.totalorder %s108, %s109
      %p120 = scmp.eq.s32.totalorder %s25, 0
      %p121 = por %p119, %p120
      %p122 = scmp.ne.s32.totalorder %s108, %s109
      %p123 = scmp.eq.s32.totalorder %s26, 3
      %p124 = por %p122, %p123
      %p126 = scmp.ne.s32.totalorder %s109, %s125
      %p127 = scmp.eq.s32.totalorder %s26, 0
      %p128 = por %p126, %p127
      %s129 = ssub.s32 %s27, %s46
      %s130 = ssub.s32 %s28, %s42
      %s131 = sor.u32 %s129, %s130
      %p132 = scmp.eq.s32.totalorder %s131, 0
      %s134 = sadd.s32 %s133, 1
      %s135 = scalar_select %p132, %s133, %s134
      %p138 = pneg %p132
      %p139 = scmp.eq.s32.totalorder %s20, 3
      %p140 = por %p138, %p139
      %p141 = scmp.ne.s32.totalorder %s133, %s136
      %p142 = scmp.eq.s32.totalorder %s20, 0
      %p143 = por %p141, %p142
      %p144 = scmp.ne.s32.totalorder %s133, %s136
      %p145 = scmp.eq.s32.totalorder %s25, 3
      %p146 = por %p144, %p145
      %p147 = scmp.ne.s32.totalorder %s136, %s137
      %p148 = scmp.eq.s32.totalorder %s25, 0
      %p149 = por %p147, %p148
      %p150 = scmp.ne.s32.totalorder %s136, %s137
      %p151 = scmp.eq.s32.totalorder %s26, 3
      %p152 = por %p150, %p151
      %p154 = scmp.ne.s32.totalorder %s137, %s153
      %p155 = scmp.eq.s32.totalorder %s26, 0
      %p156 = por %p154, %p155
      %p157 = scmp.le.s32.totalorder 1, %s20
      %p158 = scmp.lt.s32.totalorder %s20, 5
      %p159 = pnand %p157, %p158
      %p160 = pneg %p159
      // Predicated region
      $region9: #{tpu_custom_call.1} parent=5 // pred_check
        _
      $region10: #{tpu_custom_call.1} parent=5 // pred_check_branch
        %162 = sbr.rel (%p159) target = $region12
      $region11: #{tpu_custom_call.1} parent=5 // pred_region
        %s163 = ssub.s32 %s20, 1
      $region12: #{tpu_custom_call.1} parent=5 // pred_fallthru
        _
      %p164 = scmp.lt.s32.totalorder %s20, 4
      // Predicated region
      $region13: #{tpu_custom_call.1} parent=5 // pred_check
        %p165 = pneg %p164
      $region14: #{tpu_custom_call.1} parent=5 // pred_check_branch
        %167 = sbr.rel (%p165) target = $region16
      $region15: #{tpu_custom_call.1} parent=5 // pred_region
        // Predicated region
        $region17: #{tpu_custom_call.1} parent=15 // pred_check
          %p168 = pneg %p61
        $region18: #{tpu_custom_call.1} parent=15 // pred_check_branch
          %170 = sbr.rel (%p168) target = $region20
        $region19: #{tpu_custom_call.1} parent=15 // pred_region
          %s171 = sand.u32 %s51, 1
          %s172 = scalar_lea.sflag [#allocation6], %s171
          %s173 = sand.u32 %s51, 1
          %s174 = smul.addr %s173, 8
          %s175 = scalar_lea.vmem [#allocation5], %s174
          %s176 = smul.u32 2, %s27
          %s178 = ssub.s32 128, 128
          %179 = vsyncadd %s172, %s178
          %s180 = smul.addr %s176, 2
          %s181 = sadd.s32 %s29, %s180
          %s182 = smul.addr %s181, 64
          %s183 = scalar_lea.hbm %s1, %s182
          %s184 = sshll.u32 %s175, 4
          %s185 = int_to_ptr.vmem [resolvable:$true] %s184
          %190 = dma.hbm_to_vmem [thread:$0]  %s183, 128, %s185, %s172, 128, 64, 4
        $region20: #{tpu_custom_call.1} parent=15 // pred_fallthru
          _
        // Predicated region
        $region21: #{tpu_custom_call.1} parent=15 // pred_check
          %p191 = pneg %p89
        $region22: #{tpu_custom_call.1} parent=15 // pred_check_branch
          %193 = sbr.rel (%p191) target = $region24
        $region23: #{tpu_custom_call.1} parent=15 // pred_region
          %s194 = sand.u32 %s79, 1
          %s195 = scalar_lea.sflag [#allocation9], %s194
          %s196 = sand.u32 %s79, 1
          %s197 = smul.addr %s196, 64
          %s198 = scalar_lea.vmem [#allocation8], %s197
          %s199 = smul.u32 16, %s29
          %s201 = ssub.s32 1024, 1024
          %202 = vsyncadd %s195, %s201
          %s203 = smul.addr %s199, 2
          %s204 = sadd.s32 %s28, %s203
          %s205 = smul.addr %s204, 64
          %s206 = scalar_lea.hbm %s2, %s205
          %s207 = sshll.u32 %s198, 4
          %s208 = int_to_ptr.vmem [resolvable:$true] %s207
          %213 = dma.hbm_to_vmem [thread:$0]  %s206, 1024, %s208, %s195, 128, 64, 4
        $region24: #{tpu_custom_call.1} parent=15 // pred_fallthru
          _
        // Predicated region
        $region25: #{tpu_custom_call.1} parent=15 // pred_check
          %p214 = pneg %p115
        $region26: #{tpu_custom_call.1} parent=15 // pred_check_branch
          %216 = sbr.rel (%p214) target = $region28
        $region27: #{tpu_custom_call.1} parent=15 // pred_region
          %p217 = scmp.lt.s32.totalorder %s28, 1
          %s218 = scalar_select %p217, %s28, 1
          %s219 = scalar_lea.vmem %s3, %s218
        $region28: #{tpu_custom_call.1} parent=15 // pred_fallthru
          _
      $region16: #{tpu_custom_call.1} parent=5 // pred_fallthru
        _
      %p220 = scmp.le.s32.totalorder 1, %s20
      %p221 = scmp.lt.s32.totalorder %s20, 5
      %p222 = pnand %p220, %p221
      %p223 = pneg %p222
      // Predicated region
      $region29: #{tpu_custom_call.1} parent=5 // pred_check
        _
      $region30: #{tpu_custom_call.1} parent=5 // pred_check_branch
        %225 = sbr.rel (%p222) target = $region32
      $region31: #{tpu_custom_call.1} parent=5 // pred_region
        %s226 = ssub.s32 %s20, 1
        %s227 = sand.u32 %s54, 1
        %s228 = scalar_lea.sflag [#allocation6], %s227
        %s229 = sand.u32 %s54, 1
        %s230 = smul.addr %s229, 8
        %s231 = scalar_lea.vmem [#allocation5], %s230
        // Predicated region
        $region33: #{tpu_custom_call.1} parent=31 // pred_check
          %p232 = pneg %p67
        $region34: #{tpu_custom_call.1} parent=31 // pred_check_branch
          %234 = sbr.rel (%p232) target = $region36
        $region35: #{tpu_custom_call.1} parent=31 // pred_region
          %235 = dma.done %s228, 128
        $region36: #{tpu_custom_call.1} parent=31 // pred_fallthru
          _
        %s236 = sand.u32 %s82, 1
        %s237 = scalar_lea.sflag [#allocation9], %s236
        %s238 = sand.u32 %s82, 1
        %s239 = smul.addr %s238, 64
        %s240 = scalar_lea.vmem [#allocation8], %s239
        // Predicated region
        $region37: #{tpu_custom_call.1} parent=31 // pred_check
          %p241 = pneg %p95
        $region38: #{tpu_custom_call.1} parent=31 // pred_check_branch
          %243 = sbr.rel (%p241) target = $region40
        $region39: #{tpu_custom_call.1} parent=31 // pred_region
          %244 = dma.done %s237, 1024
        $region40: #{tpu_custom_call.1} parent=31 // pred_fallthru
          _
        %s245 = sand.u32 %s54, 1
        %s246 = scalar_lea.sflag [#allocation6], %s245
        %s247 = sand.u32 %s54, 1
        %s248 = smul.addr %s247, 8
        %s249 = scalar_lea.vmem [#allocation5], %s248
        %p250 = pneg %p67
        %p251 = pneg %p64
        %s252 = sand.u32 %s82, 1
        %s253 = scalar_lea.sflag [#allocation9], %s252
        %s254 = sand.u32 %s82, 1
        %s255 = smul.addr %s254, 64
        %s256 = scalar_lea.vmem [#allocation8], %s255
        %p257 = pneg %p95
        %p258 = pneg %p92
        %p259 = scmp.lt.s32.totalorder %s31, 1
        %s260 = scalar_select %p259, %s31, 1
        %s261 = scalar_lea.vmem %s3, %s260
        %p262 = pneg %p121
        %p263 = pneg %p118
        %p264 = pneg %p149
        %p265 = pneg %p146
        %s266 = sand.u32 %s136, 1
        %s267 = scalar_lea.sflag [#allocation7], %s266
        %s268 = sand.u32 %s136, 1
        %s269 = smul.addr %s268, 16
        %s270 = scalar_lea.vmem [#allocation10], %s269
        %s271 = smul.u32 2, %s30
        %s272 = smul.u32 16, %s32
        %p273 = scmp.lt.s32.totalorder %s31, 1
        %s274 = scalar_select %p273, %s31, 1
        %s275 = scalar_lea.vmem %s3, %s274
        %s276 = smul.u32 2, %s30
        %p278 = scmp.eq.s32.totalorder %s32, 0
        // Predicated region
        $region41: #{tpu_custom_call.1} parent=31 // pred_check
          %p279 = pneg %p278
        $region42: #{tpu_custom_call.1} parent=31 // pred_check_branch
          %281 = sbr.rel (%p279) target = $region44
        $region43: #{tpu_custom_call.1} parent=31 // pred_region
          %282 = vst [vmem:[#allocation2] sm:$0xff] 0.0
          %283 = vst [vmem:[#allocation2 + $0x8] sm:$0xff] 0.0
        $region44: #{tpu_custom_call.1} parent=31 // pred_fallthru
          _
        %v284 = vld [vmem:[#allocation2] sm:$0xff]
        %v285 = vld [vmem:[#allocation2 + $0x8] sm:$0xff]
        %v286 = vld [vmem:[%s231] sm:$0xf]
        %v287 = vld [vmem:[%s231 + $0x4] sm:$0xf]
        %v288 = vld [vmem:[%s240] sm:$0xf]
        %v289 = vld [vmem:[%s240 + $0x4] sm:$0xf]
        %v290 = vld [vmem:[%s240 + $0x8] sm:$0xf]
        %v291 = vld [vmem:[%s240 + $0xc] sm:$0xf]
        %v292 = vld [vmem:[%s240 + $0x10] sm:$0xf]
        %v293 = vld [vmem:[%s240 + $0x14] sm:$0xf]
        %v294 = vld [vmem:[%s240 + $0x18] sm:$0xf]
        %v295 = vld [vmem:[%s240 + $0x1c] sm:$0xf]
        %v296 = vld [vmem:[%s240 + $0x20] sm:$0xf]
        %v297 = vld [vmem:[%s240 + $0x24] sm:$0xf]
        %v298 = vld [vmem:[%s240 + $0x28] sm:$0xf]
        %v299 = vld [vmem:[%s240 + $0x2c] sm:$0xf]
        %v300 = vld [vmem:[%s240 + $0x30] sm:$0xf]
        %v301 = vld [vmem:[%s240 + $0x34] sm:$0xf]
        %v302 = vld [vmem:[%s240 + $0x38] sm:$0xf]
        %v303 = vld [vmem:[%s240 + $0x3c] sm:$0xf]
        %v306 = vunpack.c.l.b16 %v286
        %v307 = vunpack.c.l.b16 %v287
        %v308 = vpack.c.b16 %v307, %v306
        %v326 = vunpack.c.l.b16 %v288
        %v327 = vunpack.c.l.b16 %v289
        %v328 = vunpack.c.l.b16 %v290
        %v329 = vunpack.c.l.b16 %v291
        %v330 = vunpack.c.l.b16 %v292
        %v331 = vunpack.c.l.b16 %v293
        %v332 = vunpack.c.l.b16 %v294
        %v333 = vunpack.c.l.b16 %v295
        %v334 = vunpack.c.l.b16 %v296
        %v335 = vunpack.c.l.b16 %v297
        %v336 = vunpack.c.l.b16 %v298
        %v337 = vunpack.c.l.b16 %v299
        %v338 = vunpack.c.l.b16 %v300
        %v339 = vunpack.c.l.b16 %v301
        %v340 = vunpack.c.l.b16 %v302
        %v341 = vunpack.c.l.b16 %v303
        %v342 = vpack.c.b16 %v327, %v326
        %v343 = vpack.c.b16 %v329, %v328
        %v344 = vpack.c.b16 %v331, %v330
        %v345 = vpack.c.b16 %v333, %v332
        %v346 = vpack.c.b16 %v335, %v334
        %v347 = vpack.c.b16 %v337, %v336
        %v348 = vpack.c.b16 %v339, %v338
        %v349 = vpack.c.b16 %v341, %v340
        %358 = vmatprep.subr.bf16.mxu0 0
        %359 = vmatpush1.bf16.msra.mxu0 %v342
        %360 = vmatprep.subr.bf16.mxu0 0
        %361 = vmatpush1.bf16.msra.mxu0 %v343
        %362 = vmatprep.subr.bf16.mxu0 0
        %363 = vmatpush1.bf16.msra.mxu0 %v344
        %364 = vmatprep.subr.bf16.mxu0 0
        %365 = vmatpush1.bf16.msra.mxu0 %v345
        %366 = vmatprep.subr.bf16.mxu0 0
        %367 = vmatpush1.bf16.msra.mxu0 %v346
        %368 = vmatprep.subr.bf16.mxu0 0
        %369 = vmatpush1.bf16.msra.mxu0 %v347
        %370 = vmatprep.subr.bf16.mxu0 0
        %371 = vmatpush1.bf16.msra.mxu0 %v348
        %372 = vmatprep.subr.bf16.mxu0 0
        %373 = vmatpush1.bf16.msra.mxu0 %v349
        %374 = vmatprep.subr.bf16.mxu0 0
        %375 = vmatpush1.bf16.msra.mxu0 0
        %376 = vmatprep.subr.bf16.mxu0 0
        %377 = vmatpush1.bf16.msra.mxu0 0
        %378 = vmatprep.subr.bf16.mxu0 0
        %379 = vmatpush1.bf16.msra.mxu0 0
        %380 = vmatprep.subr.bf16.mxu0 0
        %381 = vmatpush1.bf16.msra.mxu0 0
        %382 = vmatprep.subr.bf16.mxu0 0
        %383 = vmatpush1.bf16.msra.mxu0 0
        %384 = vmatprep.subr.bf16.mxu0 0
        %385 = vmatpush1.bf16.msra.mxu0 0
        %386 = vmatprep.subr.bf16.mxu0 0
        %387 = vmatpush1.bf16.msra.mxu0 0
        %388 = vmatprep.subr.bf16.mxu0 0
        %389 = vmatpush1.bf16.msra.mxu0 0
        %390 = vmatprep.mubr.bf16.mxu0 0
        %391 = vmatmul.mubr.bf16.gmra.mrb[0].mxu0 %v308
        %v392 = vpop.f32.mrb[0].mxu0
        %v393 = vadd.f32 0.0, %v392
        %v394 = vpop.f32.mrb[0].mxu0
        %v395 = vpop.f32.mrb[0].mxu0
        %v396 = vadd.f32 0.0, %v395
        %v397 = vpop.f32.mrb[0].mxu0
        %398 = vdwg.mxu0
        %v399 = vadd.f32 %v284, %v393
        %v400 = vadd.f32 %v285, %v396
        %401 = vst [vmem:[#allocation2] sm:$0xff] %v399
        %402 = vst [vmem:[#allocation2 + $0x8] sm:$0xff] %v400
        %p403 = scmp.eq.s32.totalorder %s32, 1
        // Predicated region
        $region45: #{tpu_custom_call.1} parent=31 // pred_check
          %p404 = pneg %p403
        $region46: #{tpu_custom_call.1} parent=31 // pred_check_branch
          %406 = sbr.rel (%p404) target = $region48
        $region47: #{tpu_custom_call.1} parent=31 // pred_region
          %s407 = sld [smem:[#allocation4]]
          %v408 = vld [vmem:[#allocation2] sm:$0xff]
          %v409 = vld [vmem:[#allocation2 + $0x8] sm:$0xff]
          %v410 = vld [vmem:[%s275] sm:$0x1]
          %v412 = vlaneseq
          %v413 = vshrl.u32 %v412, 7
          %v414 = vsub.s32 0, %v413
          %v415 = vrot.slane %v410, %v414
          %v417 = vadd.f32 %v408, %v415
          %v418 = vadd.f32 %v409, %v415
          %v419 = vstv %s407
          %v420 = vmul.f32 %v417, %v419
          %v421 = vmul.f32 %v418, %v419
          %422 = vst [vmem:[%s270] sm:$0xff] %v420
          %423 = vst [vmem:[%s270 + $0x8] sm:$0xff] %v421
        $region48: #{tpu_custom_call.1} parent=31 // pred_fallthru
          _
        %s424 = sand.u32 %s136, 1
        %s425 = scalar_lea.sflag [#allocation7], %s424
        %s426 = sand.u32 %s136, 1
        %s427 = smul.addr %s426, 16
        %s428 = scalar_lea.vmem [#allocation10], %s427
        // Predicated region
        $region49: #{tpu_custom_call.1} parent=31 // pred_check
          %p429 = pneg %p146
        $region50: #{tpu_custom_call.1} parent=31 // pred_check_branch
          %431 = sbr.rel (%p429) target = $region52
        $region51: #{tpu_custom_call.1} parent=31 // pred_region
          %s432 = smul.u32 2, %s30
          %s434 = ssub.s32 256, 256
          %435 = vsyncadd %s425, %s434
          %s436 = smul.addr %s432, 2
          %s437 = sadd.s32 %s31, %s436
          %s438 = smul.addr %s437, 128
          %s439 = scalar_lea.hbm %s4, %s438
          %s440 = sshll.u32 %s428, 4
          %s441 = int_to_ptr.vmem [resolvable:$true] %s440
          %446 = dma.vmem_to_hbm [thread:$0]  %s441, 256, %s439, %s425, 128, 256, 8
        $region52: #{tpu_custom_call.1} parent=31 // pred_fallthru
          _
      $region32: #{tpu_custom_call.1} parent=5 // pred_fallthru
        _
      %p447 = scmp.le.s32.totalorder 2, %s20
      // Predicated region
      $region53: #{tpu_custom_call.1} parent=5 // pred_check
        %p448 = pneg %p447
      $region54: #{tpu_custom_call.1} parent=5 // pred_check_branch
        %450 = sbr.rel (%p448) target = $region56
      $region55: #{tpu_custom_call.1} parent=5 // pred_region
        %s451 = ssub.s32 %s20, 2
        // Predicated region
        $region57: #{tpu_custom_call.1} parent=55 // pred_check
          %p452 = pneg %p152
        $region58: #{tpu_custom_call.1} parent=55 // pred_check_branch
          %454 = sbr.rel (%p452) target = $region60
        $region59: #{tpu_custom_call.1} parent=55 // pred_region
          %s455 = sand.u32 %s137, 1
          %s456 = scalar_lea.sflag [#allocation7], %s455
          %s457 = sand.u32 %s137, 1
          %s458 = smul.addr %s457, 16
          %s459 = scalar_lea.vmem [#allocation10], %s458
          %460 = dma.done %s456, 256
        $region60: #{tpu_custom_call.1} parent=55 // pred_fallthru
          _
      $region56: #{tpu_custom_call.1} parent=5 // pred_fallthru
        _
    $region6: #{tpu_custom_call.1} parent=1 // loop_footer
      %s24 = sadd.s32 1, %s20
    $region7: #{tpu_custom_call.1} parent=1 // loop_footer_branch
      %19 = sbr.rel target = $region3
    $region8: #{tpu_custom_call.1} parent=1 // loop_exit
      _
    %461 = vsyncpa [#allocation6], 1
    %s462 = scalar_lea.sflag [#allocation6], 1
    %463 = vsyncpa %s462, 1
    %464 = vsyncpa [#allocation9], 1
    %s465 = scalar_lea.sflag [#allocation9], 1
    %466 = vsyncpa %s465, 1
    %467 = vsyncpa [#allocation7], 1
    %s468 = scalar_lea.sflag [#allocation7], 1
    %469 = vsyncpa %s468, 1

</llo_original>
